<compile_context>
chip_gen: v7x
topology: tpu7x:2x2x1
jax: 0.10.0
libtpu: 0.0.40
codegen_flags: <defaults>
</compile_context>

<pallas_src>
import functools

import jax
import jax.numpy as jnp
from jax.experimental import pallas as pl
from jax.experimental.pallas import tpu as pltpu


def _channel_attention_kernel(x_ref, w1a_ref, w2a_ref, w1m_ref, w2m_ref,
                              o_ref, sum_acc, max_acc,
                              *, hw_total, hw_tile, need_mask):
    s = pl.program_id(1)                              # HW (reduction) step
    n_s = pl.num_programs(1)

    @pl.when(s == 0)
    def _():
        sum_acc[...] = jnp.zeros_like(sum_acc)
        max_acc[...] = jnp.full_like(max_acc, -jnp.inf)

    x = x_ref[...]                                    # (b_tile, C, hw_tile), native dtype

    def _accumulate(x_sum, x_max):
        # Accumulate in f32; inputs stay in their native dtype until the reduce.
        sum_acc[...] += jnp.sum(x_sum, axis=-1, dtype=jnp.float32)
        max_acc[...] = jnp.maximum(max_acc[...],
                                   jnp.max(x_max, axis=-1).astype(jnp.float32))

    if need_mask:
        # Only the final HW step can be ragged: full tiles accumulate unmasked
        # (keeps the main loop purely DMA-bound); the tail tile masks the
        # out-of-range lanes with a lane-only iota (no full-tile int32 tensor).
        @pl.when(s < n_s - 1)
        def _():
            _accumulate(x, x)

        @pl.when(s == n_s - 1)
        def _():
            lane = jax.lax.broadcasted_iota(jnp.int32, (1, 1, hw_tile), 2)
            valid = lane < (hw_total - s * hw_tile)
            _accumulate(jnp.where(valid, x, jnp.zeros_like(x)),
                        jnp.where(valid, x, jnp.full_like(x, -jnp.inf)))
    else:
        _accumulate(x, x)

    @pl.when(s == n_s - 1)
    def _():
        avg = sum_acc[...] * (1.0 / hw_total)         # (b_tile, C) f32
        mx = max_acc[...]                             # (b_tile, C) f32

        # Weights were pre-transposed in the wrapper; feed them in their native
        # dtype and let preferred_element_type request the f32 accumulator.
        h_avg = jnp.maximum(
            jnp.dot(avg, w1a_ref[...], preferred_element_type=jnp.float32), 0.0)
        avg_out = jnp.dot(h_avg, w2a_ref[...], preferred_element_type=jnp.float32)

        h_max = jnp.maximum(
            jnp.dot(mx, w1m_ref[...], preferred_element_type=jnp.float32), 0.0)
        max_out = jnp.dot(h_max, w2m_ref[...], preferred_element_type=jnp.float32)

        o_ref[...] = jax.nn.sigmoid(avg_out + max_out).astype(o_ref.dtype)


def _auto_hw_tile(hw, b_tile, c, itemsize, target_bytes=6 << 20):
    """Pick a spatial tile targeting ~4-8 MiB per x block, preferring one that
    divides HW exactly (no ragged tail / masking)."""
    row_bytes = max(1, b_tile * c * itemsize)
    if hw * row_bytes <= target_bytes or hw < 256:
        return hw                                     # full extent: always legal
    t = (target_bytes // row_bytes // 128) * 128
    t = max(128, min(t, (hw // 128) * 128))           # multiple of 128 lanes
    # Prefer an exact divisor of HW, as long as it stays within 2x of target.
    cand = t
    floor = max(128, t // 2)
    while cand >= floor:
        if hw % cand == 0:
            return cand
        cand -= 128
    return t                                          # ragged tail; masked on last step only


def channel_attention(x_nchw, w1a, w2a, w1m, w2m, *, hw_tile=None, b_tile=None,
                      x_buffers=3):
    """x_nchw: (B, C, H, W). Returns (B, C, 1, 1) attention weights."""
    B, C, H, W = x_nchw.shape
    if not jnp.issubdtype(x_nchw.dtype, jnp.floating):
        raise ValueError("channel_attention expects floating-point inputs "
                         "(the max-pool identity is -inf).")
    Cr = w1a.shape[0]
    HW = H * W
    itemsize = jnp.dtype(x_nchw.dtype).itemsize
    x_flat = x_nchw.reshape(B, C, HW)

    if b_tile is None:
        # f32 output blocks need a multiple-of-8 (or full-B) batch tile; 8 also
        # gives >= 2 blocks on the parallel batch axis whenever B >= 16, so on
        # v7x both TensorCores get grid work for this bandwidth-bound op.
        b_tile = 8 if (B % 8 == 0) else B
    if B % b_tile != 0:
        raise ValueError(f"b_tile={b_tile} must divide B={B}")
    if hw_tile is None:
        hw_tile = _auto_hw_tile(HW, b_tile, C, itemsize)
    if hw_tile != HW and hw_tile % 128 != 0:
        raise ValueError(f"hw_tile={hw_tile} must equal H*W={HW} or be a "
                         "multiple of 128")

    n_b = B // b_tile
    n_hw = pl.cdiv(HW, hw_tile)
    need_mask = (HW % hw_tile) != 0

    # Pre-transpose the 1x1-conv weights once outside the kernel.
    w1a_t = jnp.transpose(w1a)                        # (C, Cr)
    w2a_t = jnp.transpose(w2a)                        # (Cr, C)
    w1m_t = jnp.transpose(w1m)                        # (C, Cr)
    w2m_t = jnp.transpose(w2m)                        # (Cr, C)

    kernel = functools.partial(
        _channel_attention_kernel,
        hw_total=HW, hw_tile=hw_tile, need_mask=need_mask)

    # x BlockSpec: optionally deepen input pipelining to 3 buffers when there
    # are enough reduction steps -- per-tile compute is ~zero so a third
    # in-flight DMA hides the fixed per-step overhead (biggest win on v7x).
    x_index_map = lambda b, s: (b, 0, s)
    x_spec = pl.BlockSpec((b_tile, C, hw_tile), x_index_map)
    x_spec_buffered = None
    n_x_buf = 2
    if x_buffers is not None and x_buffers > 2 and n_hw >= x_buffers:
        try:
            x_spec_buffered = pl.BlockSpec((b_tile, C, hw_tile), x_index_map,
                                           pipeline_mode=pl.Buffered(x_buffers))
            n_x_buf = x_buffers
        except Exception:
            x_spec_buffered = None

    # Scoped-VMEM request: x pipeline buffers + (tiny) weights, accumulators
    # and output, with margin -- capped per generation (v7x only has 64 MiB).
    x_block_bytes = b_tile * C * hw_tile * itemsize
    w_bytes = 4 * C * Cr * jnp.dtype(w1a.dtype).itemsize
    small_bytes = 2 * b_tile * C * 4 + 2 * b_tile * C * 4   # accs + out buffers
    needed = n_x_buf * x_block_bytes + 2 * w_bytes + small_bytes
    try:
        vmem_cap = getattr(pltpu.get_tpu_info(), "vmem_capacity_bytes", 64 << 20)
    except Exception:
        vmem_cap = 64 << 20                           # assume smallest (v7x)
    vmem_limit = min(max(32 << 20, int(needed * 1.25) + (2 << 20)),
                     (int(vmem_cap) * 3) // 4)

    def _run(spec):
        return pl.pallas_call(
            kernel,
            # Keep kernel output in f32 (legal out block for any input dtype);
            # cast back to the input dtype outside.
            out_shape=jax.ShapeDtypeStruct((B, C), jnp.float32),
            grid=(n_b, n_hw),                         # reduction (HW) axis last
            in_specs=[
                spec,
                # Constant block index -> weights stay resident across HW steps.
                pl.BlockSpec((C, Cr), lambda b, s: (0, 0)),
                pl.BlockSpec((Cr, C), lambda b, s: (0, 0)),
                pl.BlockSpec((C, Cr), lambda b, s: (0, 0)),
                pl.BlockSpec((Cr, C), lambda b, s: (0, 0)),
            ],
            out_specs=pl.BlockSpec((b_tile, C), lambda b, s: (b, 0)),
            scratch_shapes=[
                pltpu.VMEM((b_tile, C), jnp.float32),     # running sum
                pltpu.VMEM((b_tile, C), jnp.float32),     # running max
            ],
            compiler_params=pltpu.CompilerParams(
                dimension_semantics=("parallel", "arbitrary"),
                vmem_limit_bytes=int(vmem_limit)),
        )(x_flat, w1a_t, w2a_t, w1m_t, w2m_t)

    def _finish(o):
        return o.reshape(B, C, 1, 1).astype(x_nchw.dtype)

    if x_spec_buffered is not None:
        try:
            return _finish(jax.block_until_ready(_run(x_spec_buffered)))
        except Exception:
            pass    # fall back to default double-buffering if Buffered(3) unsupported
    return _finish(_run(x_spec))


def reference(x_nchw, w1a, w2a, w1m, w2m):
    """Pure-JAX reference mirroring the PyTorch forward."""
    xf = x_nchw.astype(jnp.float32)
    avg = jnp.mean(xf, axis=(2, 3))                   # (B, C)
    mx = jnp.max(xf, axis=(2, 3))                     # (B, C)
    a = jnp.dot(jnp.maximum(avg @ w1a.T, 0.0), w2a.T)
    m = jnp.dot(jnp.maximum(mx @ w1m.T, 0.0), w2m.T)
    return jax.nn.sigmoid(a + m)[:, :, None, None]


if __name__ == "__main__":
    # Small shapes consistent with the module: reduction=16 needs C >= 16.
    B, C, reduction = 2, 32, 16
    Cr = C // reduction

    key = jax.random.PRNGKey(0)
    kx1, kx2, k1, k2, k3, k4 = jax.random.split(key, 6)

    # Conv2d 1x1 weights with kernel dims squeezed: fc*[0].weight (Cr, C),
    # fc*[2].weight (C, Cr). Deterministic synthetic init.
    w1a = jax.random.normal(k1, (Cr, C), dtype=jnp.float32) * 0.1
    w2a = jax.random.normal(k2, (C, Cr), dtype=jnp.float32) * 0.1
    w1m = jax.random.normal(k3, (Cr, C), dtype=jnp.float32) * 0.1
    w2m = jax.random.normal(k4, (C, Cr), dtype=jnp.float32) * 0.1

    # Case 1: HW = 256, hw_tile = 128 -> two full reduction steps, no masking
    # (exercises init / accumulate / epilogue across the pipelined grid).
    x1 = jax.random.normal(kx1, (B, C, 16, 16), dtype=jnp.float32)
    out1 = jax.block_until_ready(
        channel_attention(x1, w1a, w2a, w1m, w2m, hw_tile=128))
    ref1 = reference(x1, w1a, w2a, w1m, w2m)
    assert out1.shape == (B, C, 1, 1), out1.shape
    assert jnp.allclose(out1, ref1, atol=1e-5, rtol=1e-5), (
        float(jnp.max(jnp.abs(out1 - ref1))))

    # Case 2: HW = 324, hw_tile = 128 -> 3 steps, ragged tail masked only on
    # the final step; also exercises the Buffered(3) input pipelining path.
    x2 = jax.random.normal(kx2, (B, C, 18, 18), dtype=jnp.float32)
    out2 = jax.block_until_ready(
        channel_attention(x2, w1a, w2a, w1m, w2m, hw_tile=128))
    ref2 = reference(x2, w1a, w2a, w1m, w2m)
    assert out2.shape == (B, C, 1, 1), out2.shape
    assert jnp.allclose(out2, ref2, atol=1e-5, rtol=1e-5), (
        float(jnp.max(jnp.abs(out2 - ref2))))

    # Case 3: fully automatic tiling (small HW -> single full-extent step).
    out3 = jax.block_until_ready(channel_attention(x1, w1a, w2a, w1m, w2m))
    assert jnp.allclose(out3, ref1, atol=1e-5, rtol=1e-5), (
        float(jnp.max(jnp.abs(out3 - ref1))))

    print("KERNEL_OK")
</pallas_src>

<mosaic_0001>
module attributes {stable_mosaic.version = 11 : i64} {
  func.func @_channel_attention_kernel(%arg0: i32, %arg1: i32, %arg2: memref<2x32x128xf32, #tpu.memory_space<vmem>>, %arg3: memref<32x2xf32, #tpu.memory_space<vmem>>, %arg4: memref<2x32xf32, #tpu.memory_space<vmem>>, %arg5: memref<32x2xf32, #tpu.memory_space<vmem>>, %arg6: memref<2x32xf32, #tpu.memory_space<vmem>>, %arg7: memref<2x32xf32, #tpu.memory_space<vmem>>, %arg8: memref<2x32xf32, #tpu.memory_space<vmem>>, %arg9: memref<2x32xf32, #tpu.memory_space<vmem>>) attributes {dimension_semantics = [#tpu.dimension_semantics<parallel>, #tpu.dimension_semantics<arbitrary>], iteration_bounds = array<i64: 1, 2>, scalar_prefetch = 0 : i64, scratch_operands = 2 : i64, tpu.core_type = #tpu.core_type<tc>, window_params = [{transform_indices = @transform_0, window_bounds = array<i64: 2, 32, 128>}, {pipeline_mode = #tpu.pipeline_mode<synchronous>, transform_indices = @transform_1, window_bounds = array<i64: 32, 2>}, {pipeline_mode = #tpu.pipeline_mode<synchronous>, transform_indices = @transform_2, window_bounds = array<i64: 2, 32>}, {pipeline_mode = #tpu.pipeline_mode<synchronous>, transform_indices = @transform_3, window_bounds = array<i64: 32, 2>}, {pipeline_mode = #tpu.pipeline_mode<synchronous>, transform_indices = @transform_4, window_bounds = array<i64: 2, 32>}, {transform_indices = @transform_5, window_bounds = array<i64: 2, 32>}]} {
    %c0_i32 = arith.constant 0 : i32
    %0 = arith.cmpi eq, %arg1, %c0_i32 : i32
    %1 = arith.extui %0 : i1 to i32
    %c0_i32_0 = arith.constant 0 : i32
    %2 = arith.cmpi ne, %1, %c0_i32_0 : i32
    scf.if %2 {
      %cst_13 = arith.constant 0.000000e+00 : f32
      %15 = vector.broadcast %cst_13 : f32 to vector<2x32xf32>
      %c0_14 = arith.constant 0 : index
      %c0_15 = arith.constant 0 : index
      %16 = vector.load %arg8[%c0_14, %c0_15] : memref<2x32xf32, #tpu.memory_space<vmem>>, vector<2x32xf32>
      tpu.vector_store %arg8[%c0_14, %c0_15], %15 {strides = array<i32>} : memref<2x32xf32, #tpu.memory_space<vmem>>, vector<2x32xf32>,
      %cst_16 = arith.constant 0xFF800000 : f32
      %17 = vector.broadcast %cst_16 : f32 to vector<2x32xf32>
      %c0_17 = arith.constant 0 : index
      %c0_18 = arith.constant 0 : index
      %18 = vector.load %arg9[%c0_17, %c0_18] : memref<2x32xf32, #tpu.memory_space<vmem>>, vector<2x32xf32>
      tpu.vector_store %arg9[%c0_17, %c0_18], %17 {strides = array<i32>} : memref<2x32xf32, #tpu.memory_space<vmem>>, vector<2x32xf32>,
    } else {
    }
    %c0 = arith.constant 0 : index
    %c0_1 = arith.constant 0 : index
    %c0_2 = arith.constant 0 : index
    %3 = vector.load %arg2[%c0, %c0_1, %c0_2] : memref<2x32x128xf32, #tpu.memory_space<vmem>>, vector<2x32x128xf32>
    %c0_3 = arith.constant 0 : index
    %c0_4 = arith.constant 0 : index
    %4 = vector.load %arg8[%c0_3, %c0_4] : memref<2x32xf32, #tpu.memory_space<vmem>>, vector<2x32xf32>
    %cst = arith.constant dense<0.000000e+00> : vector<2x32xf32>
    %5 = vector.multi_reduction <add>, %3, %cst [2] : vector<2x32x128xf32> to vector<2x32xf32>
    %6 = arith.addf %4, %5 : vector<2x32xf32>
    %c0_5 = arith.constant 0 : index
    %c0_6 = arith.constant 0 : index
    %7 = vector.load %arg8[%c0_5, %c0_6] : memref<2x32xf32, #tpu.memory_space<vmem>>, vector<2x32xf32>
    tpu.vector_store %arg8[%c0_5, %c0_6], %6 {strides = array<i32>} : memref<2x32xf32, #tpu.memory_space<vmem>>, vector<2x32xf32>,
    %c0_7 = arith.constant 0 : index
    %c0_8 = arith.constant 0 : index
    %8 = vector.load %arg9[%c0_7, %c0_8] : memref<2x32xf32, #tpu.memory_space<vmem>>, vector<2x32xf32>
    %cst_9 = arith.constant dense<0xFF800000> : vector<2x32xf32>
    %9 = vector.multi_reduction <maximumf>, %3, %cst_9 [2] : vector<2x32x128xf32> to vector<2x32xf32>
    %10 = arith.maximumf %8, %9 : vector<2x32xf32>
    %c0_10 = arith.constant 0 : index
    %c0_11 = arith.constant 0 : index
    %11 = vector.load %arg9[%c0_10, %c0_11] : memref<2x32xf32, #tpu.memory_space<vmem>>, vector<2x32xf32>
    tpu.vector_store %arg9[%c0_10, %c0_11], %10 {strides = array<i32>} : memref<2x32xf32, #tpu.memory_space<vmem>>, vector<2x32xf32>,
    %c1_i32 = arith.constant 1 : i32
    %12 = arith.cmpi eq, %arg1, %c1_i32 : i32
    %13 = arith.extui %12 : i1 to i32
    %c0_i32_12 = arith.constant 0 : i32
    %14 = arith.cmpi ne, %13, %c0_i32_12 : i32
    scf.if %14 {
      %c0_13 = arith.constant 0 : index
      %c0_14 = arith.constant 0 : index
      %15 = vector.load %arg8[%c0_13, %c0_14] : memref<2x32xf32, #tpu.memory_space<vmem>>, vector<2x32xf32>
      %cst_15 = arith.constant 3.906250e-03 : f32
      %16 = vector.broadcast %cst_15 : f32 to vector<2x32xf32>
      %17 = arith.mulf %15, %16 : vector<2x32xf32>
      %c0_16 = arith.constant 0 : index
      %c0_17 = arith.constant 0 : index
      %18 = vector.load %arg9[%c0_16, %c0_17] : memref<2x32xf32, #tpu.memory_space<vmem>>, vector<2x32xf32>
      %c0_18 = arith.constant 0 : index
      %c0_19 = arith.constant 0 : index
      %19 = vector.load %arg3[%c0_18, %c0_19] : memref<32x2xf32, #tpu.memory_space<vmem>>, vector<32x2xf32>
      %cst_20 = arith.constant dense<0.000000e+00> : vector<2x2xf32>
      %20 = tpu.matmul %17, %19, %cst_20 {dimension_numbers = #tpu.dot_dimension_numbers<[1], [0], [0], [1], [0, 0, 1, 1], [], []>} : vector<2x32xf32>, vector<32x2xf32>, vector<2x2xf32> -> vector<2x2xf32>
      %cst_21 = arith.constant 0.000000e+00 : f32
      %21 = vector.broadcast %cst_21 : f32 to vector<2x2xf32>
      %22 = arith.maximumf %20, %21 : vector<2x2xf32>
      %c0_22 = arith.constant 0 : index
      %c0_23 = arith.constant 0 : index
      %23 = vector.load %arg4[%c0_22, %c0_23] : memref<2x32xf32, #tpu.memory_space<vmem>>, vector<2x32xf32>
      %cst_24 = arith.constant dense<0.000000e+00> : vector<2x32xf32>
      %24 = tpu.matmul %22, %23, %cst_24 {dimension_numbers = #tpu.dot_dimension_numbers<[1], [0], [0], [1], [0, 0, 1, 1], [], []>} : vector<2x2xf32>, vector<2x32xf32>, vector<2x32xf32> -> vector<2x32xf32>
      %c0_25 = arith.constant 0 : index
      %c0_26 = arith.constant 0 : index
      %25 = vector.load %arg5[%c0_25, %c0_26] : memref<32x2xf32, #tpu.memory_space<vmem>>, vector<32x2xf32>
      %cst_27 = arith.constant dense<0.000000e+00> : vector<2x2xf32>
      %26 = tpu.matmul %18, %25, %cst_27 {dimension_numbers = #tpu.dot_dimension_numbers<[1], [0], [0], [1], [0, 0, 1, 1], [], []>} : vector<2x32xf32>, vector<32x2xf32>, vector<2x2xf32> -> vector<2x2xf32>
      %cst_28 = arith.constant 0.000000e+00 : f32
      %27 = vector.broadcast %cst_28 : f32 to vector<2x2xf32>
      %28 = arith.maximumf %26, %27 : vector<2x2xf32>
      %c0_29 = arith.constant 0 : index
      %c0_30 = arith.constant 0 : index
      %29 = vector.load %arg6[%c0_29, %c0_30] : memref<2x32xf32, #tpu.memory_space<vmem>>, vector<2x32xf32>
      %cst_31 = arith.constant dense<0.000000e+00> : vector<2x32xf32>
      %30 = tpu.matmul %28, %29, %cst_31 {dimension_numbers = #tpu.dot_dimension_numbers<[1], [0], [0], [1], [0, 0, 1, 1], [], []>} : vector<2x2xf32>, vector<2x32xf32>, vector<2x32xf32> -> vector<2x32xf32>
      %31 = arith.addf %24, %30 : vector<2x32xf32>
      %32 = arith.negf %31 : vector<2x32xf32>
      %33 = math.exp %32 : vector<2x32xf32>
      %cst_32 = arith.constant 1.000000e+00 : f32
      %34 = vector.broadcast %cst_32 : f32 to vector<2x32xf32>
      %35 = arith.addf %34, %33 : vector<2x32xf32>
      %36 = arith.divf %34, %35 : vector<2x32xf32>
      %c0_33 = arith.constant 0 : index
      %c0_34 = arith.constant 0 : index
      %37 = vector.load %arg7[%c0_33, %c0_34] : memref<2x32xf32, #tpu.memory_space<vmem>>, vector<2x32xf32>
      tpu.vector_store %arg7[%c0_33, %c0_34], %36 {strides = array<i32>} : memref<2x32xf32, #tpu.memory_space<vmem>>, vector<2x32xf32>,
    } else {
    }
    return
  }
  func.func @transform_0(%arg0: i32, %arg1: i32) -> (i32, i32, i32) {
    %c0_i32 = arith.constant 0 : i32
    %c0_i32_0 = arith.constant 0 : i32
    return %arg0, %c0_i32, %arg1 : i32, i32, i32
  }
  func.func @transform_1(%arg0: i32, %arg1: i32) -> (i32, i32) {
    %c0_i32 = arith.constant 0 : i32
    %c0_i32_0 = arith.constant 0 : i32
    %c0_i32_1 = arith.constant 0 : i32
    return %c0_i32, %c0_i32_0 : i32, i32
  }
  func.func @transform_2(%arg0: i32, %arg1: i32) -> (i32, i32) {
    %c0_i32 = arith.constant 0 : i32
    %c0_i32_0 = arith.constant 0 : i32
    %c0_i32_1 = arith.constant 0 : i32
    return %c0_i32, %c0_i32_0 : i32, i32
  }
  func.func @transform_3(%arg0: i32, %arg1: i32) -> (i32, i32) {
    %c0_i32 = arith.constant 0 : i32
    %c0_i32_0 = arith.constant 0 : i32
    %c0_i32_1 = arith.constant 0 : i32
    return %c0_i32, %c0_i32_0 : i32, i32
  }
  func.func @transform_4(%arg0: i32, %arg1: i32) -> (i32, i32) {
    %c0_i32 = arith.constant 0 : i32
    %c0_i32_0 = arith.constant 0 : i32
    %c0_i32_1 = arith.constant 0 : i32
    return %c0_i32, %c0_i32_0 : i32, i32
  }
  func.func @transform_5(%arg0: i32, %arg1: i32) -> (i32, i32) {
    %c0_i32 = arith.constant 0 : i32
    %c0_i32_0 = arith.constant 0 : i32
    return %arg0, %c0_i32 : i32, i32
  }
}

</mosaic_0001>

<llo_original>
// kernel: tpu_custom_call.1
$region0: #{tpu_custom_call.1}
  #allocation0 [shape = 'u32[]', space=smem, size = 0x4, offset = 0x4, fixed_abs, tag = 'smem constant byte address 0x4 - core index']
  #allocation1 [shape = 'u32[144,128]{1,0:T(1,128)}', space=vmem, size = 0x12000, scoped, tag = 'internal scratch']
  #allocation2 [shape = 'f32[2,32]{1,0:T(2,128)}', space=vmem, size = 0x400, scoped, tag = 'scratch operand']
  #allocation3 [shape = 'f32[2,32]{1,0:T(2,128)}', space=vmem, size = 0x400, scoped, tag = 'scratch operand']
  %s0 = inlined_call_operand.hbm [shape: f32[2,32,256], index: 0, kind: input, shape index: {}]
  %s1 = inlined_call_operand.vmem [shape: f32[32,2], index: 1, kind: input, shape index: {}]
  %s2 = inlined_call_operand.vmem [shape: f32[2,32], index: 2, kind: input, shape index: {}]
  %s3 = inlined_call_operand.vmem [shape: f32[32,2], index: 3, kind: input, shape index: {}]
  %s4 = inlined_call_operand.vmem [shape: f32[2,32], index: 4, kind: input, shape index: {}]
  %s5 = inlined_call_operand.hbm [shape: f32[2,32], index: 5, kind: output, shape index: {}]
  %s6 = sld [smem:[#allocation0]]
  $region65: #{tpu_custom_call.1} parent=0
    _
  %s8 = ssub.s32 1, %s6
  %s9 = scalar_select 0, %s8, %s6
  $region1: #{tpu_custom_call.1} parent=0
    #allocation4 [shape = 'u8[65536]{0}', space=vmem, size = 0x10000, scoped, tag = 'input window, operand 0']
    #allocation5 [shape = 's32[2]{0}', space=sflag, size = 0x8, scoped, tag = 'scoped memory for tpu_custom_call.1']
    #allocation6 [shape = 's32[2]{0}', space=sflag, size = 0x8, scoped, tag = 'scoped memory for tpu_custom_call.1']
    #allocation7 [shape = 'u8[1024]{0}', space=vmem, size = 0x400, scoped, tag = 'output window, operand 0, single buffered']
    %10 = vsyncpa [#allocation5], 0
    %s11 = scalar_lea.sflag [#allocation5], 1
    %12 = vsyncpa %s11, 0
    %13 = vsyncpa [#allocation6], 0
    loop: start=0, step=1, limit=4
    $region2: #{tpu_custom_call.1} parent=1 // loop_pre_header
      _
    $region3: #{tpu_custom_call.1} parent=1 // loop_header
      %s15 = sphi 0, %s19
      %p16 = scmp.ge.s32.totalorder %s15, 4
      %s22 = sphi 0, %s34
      %s23 = sphi 0, %s30
      %s24 = sphi 0, %s22
      %s25 = sphi 0, %s23
      %s26 = sphi 0, %s24
      %s27 = sphi 0, %s25
      %s39 = sphi 0, %s41
      %s42 = sphi 0, %s39
      %s43 = sphi 0, %s42
      %s59 = sphi 0, %s43
      %s63 = sphi 0, %s63
      %s65 = sphi 0, %s63
      %s66 = sphi 0, %s65
      %s80 = sphi 0, %s66
      %s84 = sphi 0, %s84
      %s86 = sphi 0, %s84
      %s87 = sphi 0, %s86
      %s101 = sphi 0, %s87
      %s105 = sphi 0, %s105
      %s107 = sphi 0, %s105
      %s108 = sphi 0, %s107
      %s122 = sphi 0, %s108
      %s126 = sphi 0, %s126
      %s128 = sphi 0, %s126
      %s129 = sphi 0, %s128
      %s143 = sphi 0, %s129
      %s149 = sphi 0, %s151
      %s152 = sphi 0, %s149
      %s153 = sphi 0, %s152
      %s169 = sphi 0, %s153
    $region4: #{tpu_custom_call.1} parent=1 // loop_header_branch
      %18 = sbr.rel (%p16) target = $region8
    $region5: #{tpu_custom_call.1} parent=1 // loop_body
      %s20 = ssub.s32 %s15, 1
      %s21 = ssub.s32 %s15, 2
      %s28 = sadd.s32 1, %s23
      %p29 = scmp.ge.s32.totalorder %s28, 2
      %s30 = scalar_select %p29, 0, %s28
      %s31 = sadd.s32 1, %s22
      %s32 = scalar_select %p29, %s31, %s22
      %p33 = scmp.ge.s32.totalorder %s32, 1
      %s34 = scalar_select %p33, 0, %s32
      %s35 = ssub.s32 %s22, %s34
      %s36 = ssub.s32 %s23, %s30
      %s37 = sor.u32 %s35, %s36
      %p38 = scmp.eq.s32.totalorder %s37, 0
      %s40 = sadd.s32 %s39, 1
      %s41 = scalar_select %p38, %s39, %s40
      %p44 = pneg %p38
      %p45 = scmp.eq.s32.totalorder %s15, 1
      %p46 = por %p44, %p45
      %p47 = scmp.ne.s32.totalorder %s39, %s42
      %p48 = scmp.eq.s32.totalorder %s15, 0
      %p49 = por %p47, %p48
      %p50 = scmp.ne.s32.totalorder %s39, %s42
      %p51 = scmp.eq.s32.totalorder %s20, 1
      %p52 = por %p50, %p51
      %p53 = scmp.ne.s32.totalorder %s42, %s43
      %p54 = scmp.eq.s32.totalorder %s20, 0
      %p55 = por %p53, %p54
      %p56 = scmp.ne.s32.totalorder %s42, %s43
      %p57 = scmp.eq.s32.totalorder %s21, 1
      %p58 = por %p56, %p57
      %p60 = scmp.ne.s32.totalorder %s43, %s59
      %p61 = scmp.eq.s32.totalorder %s21, 0
      %p62 = por %p60, %p61
      %s64 = sadd.s32 %s63, 1
      %p67 = scmp.eq.s32.totalorder %s15, 1
      %p68 = scmp.ne.s32.totalorder %s63, %s65
      %p69 = scmp.eq.s32.totalorder %s15, 0
      %p70 = por %p68, %p69
      %p71 = scmp.ne.s32.totalorder %s63, %s65
      %p72 = scmp.eq.s32.totalorder %s20, 1
      %p73 = por %p71, %p72
      %p74 = scmp.ne.s32.totalorder %s65, %s66
      %p75 = scmp.eq.s32.totalorder %s20, 0
      %p76 = por %p74, %p75
      %p77 = scmp.ne.s32.totalorder %s65, %s66
      %p78 = scmp.eq.s32.totalorder %s21, 1
      %p79 = por %p77, %p78
      %p81 = scmp.ne.s32.totalorder %s66, %s80
      %p82 = scmp.eq.s32.totalorder %s21, 0
      %p83 = por %p81, %p82
      %s85 = sadd.s32 %s84, 1
      %p88 = scmp.eq.s32.totalorder %s15, 1
      %p89 = scmp.ne.s32.totalorder %s84, %s86
      %p90 = scmp.eq.s32.totalorder %s15, 0
      %p91 = por %p89, %p90
      %p92 = scmp.ne.s32.totalorder %s84, %s86
      %p93 = scmp.eq.s32.totalorder %s20, 1
      %p94 = por %p92, %p93
      %p95 = scmp.ne.s32.totalorder %s86, %s87
      %p96 = scmp.eq.s32.totalorder %s20, 0
      %p97 = por %p95, %p96
      %p98 = scmp.ne.s32.totalorder %s86, %s87
      %p99 = scmp.eq.s32.totalorder %s21, 1
      %p100 = por %p98, %p99
      %p102 = scmp.ne.s32.totalorder %s87, %s101
      %p103 = scmp.eq.s32.totalorder %s21, 0
      %p104 = por %p102, %p103
      %s106 = sadd.s32 %s105, 1
      %p109 = scmp.eq.s32.totalorder %s15, 1
      %p110 = scmp.ne.s32.totalorder %s105, %s107
      %p111 = scmp.eq.s32.totalorder %s15, 0
      %p112 = por %p110, %p111
      %p113 = scmp.ne.s32.totalorder %s105, %s107
      %p114 = scmp.eq.s32.totalorder %s20, 1
      %p115 = por %p113, %p114
      %p116 = scmp.ne.s32.totalorder %s107, %s108
      %p117 = scmp.eq.s32.totalorder %s20, 0
      %p118 = por %p116, %p117
      %p119 = scmp.ne.s32.totalorder %s107, %s108
      %p120 = scmp.eq.s32.totalorder %s21, 1
      %p121 = por %p119, %p120
      %p123 = scmp.ne.s32.totalorder %s108, %s122
      %p124 = scmp.eq.s32.totalorder %s21, 0
      %p125 = por %p123, %p124
      %s127 = sadd.s32 %s126, 1
      %p130 = scmp.eq.s32.totalorder %s15, 1
      %p131 = scmp.ne.s32.totalorder %s126, %s128
      %p132 = scmp.eq.s32.totalorder %s15, 0
      %p133 = por %p131, %p132
      %p134 = scmp.ne.s32.totalorder %s126, %s128
      %p135 = scmp.eq.s32.totalorder %s20, 1
      %p136 = por %p134, %p135
      %p137 = scmp.ne.s32.totalorder %s128, %s129
      %p138 = scmp.eq.s32.totalorder %s20, 0
      %p139 = por %p137, %p138
      %p140 = scmp.ne.s32.totalorder %s128, %s129
      %p141 = scmp.eq.s32.totalorder %s21, 1
      %p142 = por %p140, %p141
      %p144 = scmp.ne.s32.totalorder %s129, %s143
      %p145 = scmp.eq.s32.totalorder %s21, 0
      %p146 = por %p144, %p145
      %s147 = ssub.s32 %s22, %s34
      %p148 = scmp.eq.s32.totalorder %s147, 0
      %s150 = sadd.s32 %s149, 1
      %s151 = scalar_select %p148, %s149, %s150
      %p154 = pneg %p148
      %p155 = scmp.eq.s32.totalorder %s15, 1
      %p156 = por %p154, %p155
      %p157 = scmp.ne.s32.totalorder %s149, %s152
      %p158 = scmp.eq.s32.totalorder %s15, 0
      %p159 = por %p157, %p158
      %p160 = scmp.ne.s32.totalorder %s149, %s152
      %p161 = scmp.eq.s32.totalorder %s20, 1
      %p162 = por %p160, %p161
      %p163 = scmp.ne.s32.totalorder %s152, %s153
      %p164 = scmp.eq.s32.totalorder %s20, 0
      %p165 = por %p163, %p164
      %p166 = scmp.ne.s32.totalorder %s152, %s153
      %p167 = scmp.eq.s32.totalorder %s21, 1
      %p168 = por %p166, %p167
      %p170 = scmp.ne.s32.totalorder %s153, %s169
      %p171 = scmp.eq.s32.totalorder %s21, 0
      %p172 = por %p170, %p171
      %p173 = scmp.le.s32.totalorder 1, %s15
      %p174 = scmp.lt.s32.totalorder %s15, 3
      %p175 = pnand %p173, %p174
      %p176 = pneg %p175
      // Predicated region
      $region9: #{tpu_custom_call.1} parent=5 // pred_check
        _
      $region10: #{tpu_custom_call.1} parent=5 // pred_check_branch
        %178 = sbr.rel (%p175) target = $region12
      $region11: #{tpu_custom_call.1} parent=5 // pred_region
        %s179 = ssub.s32 %s15, 1
        // Predicated region
        $region13: #{tpu_custom_call.1} parent=11 // pred_check
          %p180 = pneg %p76
        $region14: #{tpu_custom_call.1} parent=11 // pred_check_branch
          %182 = sbr.rel (%p180) target = $region16
        $region15: #{tpu_custom_call.1} parent=11 // pred_region
          _
        $region16: #{tpu_custom_call.1} parent=11 // pred_fallthru
          _
        // Predicated region
        $region17: #{tpu_custom_call.1} parent=11 // pred_check
          %p183 = pneg %p97
        $region18: #{tpu_custom_call.1} parent=11 // pred_check_branch
          %185 = sbr.rel (%p183) target = $region20
        $region19: #{tpu_custom_call.1} parent=11 // pred_region
          _
        $region20: #{tpu_custom_call.1} parent=11 // pred_fallthru
          _
        // Predicated region
        $region21: #{tpu_custom_call.1} parent=11 // pred_check
          %p186 = pneg %p118
        $region22: #{tpu_custom_call.1} parent=11 // pred_check_branch
          %188 = sbr.rel (%p186) target = $region24
        $region23: #{tpu_custom_call.1} parent=11 // pred_region
          _
        $region24: #{tpu_custom_call.1} parent=11 // pred_fallthru
          _
        // Predicated region
        $region25: #{tpu_custom_call.1} parent=11 // pred_check
          %p189 = pneg %p139
        $region26: #{tpu_custom_call.1} parent=11 // pred_check_branch
          %191 = sbr.rel (%p189) target = $region28
        $region27: #{tpu_custom_call.1} parent=11 // pred_region
          _
        $region28: #{tpu_custom_call.1} parent=11 // pred_fallthru
          _
      $region12: #{tpu_custom_call.1} parent=5 // pred_fallthru
        _
      %p192 = scmp.lt.s32.totalorder %s15, 2
      // Predicated region
      $region29: #{tpu_custom_call.1} parent=5 // pred_check
        %p193 = pneg %p192
      $region30: #{tpu_custom_call.1} parent=5 // pred_check_branch
        %195 = sbr.rel (%p193) target = $region32
      $region31: #{tpu_custom_call.1} parent=5 // pred_region
        // Predicated region
        $region33: #{tpu_custom_call.1} parent=31 // pred_check
          %p196 = pneg %p49
        $region34: #{tpu_custom_call.1} parent=31 // pred_check_branch
          %198 = sbr.rel (%p196) target = $region36
        $region35: #{tpu_custom_call.1} parent=31 // pred_region
          %s199 = sand.u32 %s39, 1
          %s200 = scalar_lea.sflag [#allocation5], %s199
          %s201 = sand.u32 %s39, 1
          %s202 = smul.addr %s201, 64
          %s203 = scalar_lea.vmem [#allocation4], %s202
          %s204 = smul.u32 2, %s22
          %s206 = ssub.s32 1024, 1024
          %207 = vsyncadd %s200, %s206
          %s208 = smul.addr %s204, 8
          %s209 = sadd.s32 %s23, %s208
          %s210 = smul.addr %s209, 128
          %s211 = scalar_lea.hbm %s0, %s210
          %s212 = sshll.u32 %s203, 4
          %s213 = int_to_ptr.vmem [resolvable:$true] %s212
          %218 = dma.hbm_to_vmem [thread:$0]  %s211, 1024, %s213, %s200, 256, 128, 8
        $region36: #{tpu_custom_call.1} parent=31 // pred_fallthru
          _
      $region32: #{tpu_custom_call.1} parent=5 // pred_fallthru
        _
      %p219 = scmp.le.s32.totalorder 1, %s15
      %p220 = scmp.lt.s32.totalorder %s15, 3
      %p221 = pnand %p219, %p220
      %p222 = pneg %p221
      // Predicated region
      $region37: #{tpu_custom_call.1} parent=5 // pred_check
        _
      $region38: #{tpu_custom_call.1} parent=5 // pred_check_branch
        %224 = sbr.rel (%p221) target = $region40
      $region39: #{tpu_custom_call.1} parent=5 // pred_region
        %s225 = ssub.s32 %s15, 1
        %s226 = sand.u32 %s42, 1
        %s227 = scalar_lea.sflag [#allocation5], %s226
        %s228 = sand.u32 %s42, 1
        %s229 = smul.addr %s228, 64
        %s230 = scalar_lea.vmem [#allocation4], %s229
        // Predicated region
        $region41: #{tpu_custom_call.1} parent=39 // pred_check
          %p231 = pneg %p55
        $region42: #{tpu_custom_call.1} parent=39 // pred_check_branch
          %233 = sbr.rel (%p231) target = $region44
        $region43: #{tpu_custom_call.1} parent=39 // pred_region
          %234 = dma.done %s227, 1024
        $region44: #{tpu_custom_call.1} parent=39 // pred_fallthru
          _
        %s235 = sand.u32 %s42, 1
        %s236 = scalar_lea.sflag [#allocation5], %s235
        %s237 = sand.u32 %s42, 1
        %s238 = smul.addr %s237, 64
        %s239 = scalar_lea.vmem [#allocation4], %s238
        %p240 = pneg %p55
        %p241 = pneg %p52
        %p242 = pneg %p76
        %p243 = pneg %p73
        %p244 = pneg %p97
        %p245 = pneg %p94
        %p246 = pneg %p118
        %p247 = pneg %p115
        %p248 = pneg %p139
        %p249 = pneg %p136
        %p250 = pneg %p165
        %p251 = pneg %p162
        %s252 = smul.u32 2, %s24
        %p253 = scmp.eq.s32.totalorder %s25, 0
        // Predicated region
        $region45: #{tpu_custom_call.1} parent=39 // pred_check
          %p254 = pneg %p253
        $region46: #{tpu_custom_call.1} parent=39 // pred_check_branch
          %256 = sbr.rel (%p254) target = $region48
        $region47: #{tpu_custom_call.1} parent=39 // pred_region
          %vm257 = vcmask 254976
          %258 = vst.msk [vmem:[#allocation2] sm:$0x3] %vm257, 0.0
          %259 = vst.msk [vmem:[#allocation3] sm:$0x3] %vm257, -inf
        $region48: #{tpu_custom_call.1} parent=39 // pred_fallthru
          _
        %v260 = vld [vmem:[%s230] sm:$0xff]
        %v261 = vld [vmem:[%s230 + $0x8] sm:$0xff]
        %v262 = vld [vmem:[%s230 + $0x10] sm:$0xff]
        %v263 = vld [vmem:[%s230 + $0x18] sm:$0xff]
        %v264 = vld [vmem:[%s230 + $0x20] sm:$0xff]
        %v265 = vld [vmem:[%s230 + $0x28] sm:$0xff]
        %v266 = vld [vmem:[%s230 + $0x30] sm:$0xff]
        %v267 = vld [vmem:[%s230 + $0x38] sm:$0xff]
        %v268 = vld [vmem:[#allocation2] sm:$0x3]
        %269 = vadd.xlane.f32.xlu0 %v260
        %v270 = vpop.xlane.xlu0 %269
        %271 = vadd.xlane.f32.xlu0 %v261
        %v272 = vpop.xlane.xlu0 %271
        %273 = vadd.xlane.f32.xlu0 %v262
        %v274 = vpop.xlane.xlu0 %273
        %275 = vadd.xlane.f32.xlu0 %v263
        %v276 = vpop.xlane.xlu0 %275
        %277 = vadd.xlane.f32.xlu0 %v264
        %v278 = vpop.xlane.xlu0 %277
        %279 = vadd.xlane.f32.xlu0 %v265
        %v280 = vpop.xlane.xlu0 %279
        %281 = vadd.xlane.f32.xlu0 %v266
        %v282 = vpop.xlane.xlu0 %281
        %283 = vadd.xlane.f32.xlu0 %v267
        %v284 = vpop.xlane.xlu0 %283
        %v293 = vlaneseq
        %v294 = vand.u32 %v293, 127
        %v295 = vlaneseq
        %v296 = vshrl.u32 %v295, 7
        %v297 = vsub.s32 %v294, %v296
        %v298 = vrot.slane %v270, %v297
        %v299 = vadd.s32 %v294, 4294967288
        %v300 = vlaneseq
        %v301 = vshrl.u32 %v300, 7
        %v302 = vsub.s32 %v299, %v301
        %v303 = vrot.slane %v272, %v302
        %vm304 = vcmask 130112
        %v305 = vsel %vm304, %v303, %v298
        %v306 = vadd.s32 %v294, 4294967280
        %v307 = vlaneseq
        %v308 = vshrl.u32 %v307, 7
        %v309 = vsub.s32 %v306, %v308
        %v310 = vrot.slane %v274, %v309
        %vm311 = vcmask 195712
        %v312 = vsel %vm311, %v310, %v305
        %v313 = vadd.s32 %v294, 4294967272
        %v314 = vlaneseq
        %v315 = vshrl.u32 %v314, 7
        %v316 = vsub.s32 %v313, %v315
        %v317 = vrot.slane %v276, %v316
        %vm318 = vcmask 261312
        %v319 = vsel %vm318, %v317, %v312
        %v320 = vlaneseq
        %v321 = vshrl.u32 %v320, 7
        %v322 = vsub.s32 %v294, %v321
        %v323 = vrot.slane %v278, %v322
        %v324 = vlaneseq
        %v325 = vshrl.u32 %v324, 7
        %v326 = vsub.s32 %v299, %v325
        %v327 = vrot.slane %v280, %v326
        %v328 = vsel %vm304, %v327, %v323
        %v329 = vlaneseq
        %v330 = vshrl.u32 %v329, 7
        %v331 = vsub.s32 %v306, %v330
        %v332 = vrot.slane %v282, %v331
        %v333 = vsel %vm311, %v332, %v328
        %v334 = vlaneseq
        %v335 = vshrl.u32 %v334, 7
        %v336 = vsub.s32 %v313, %v335
        %v337 = vrot.slane %v284, %v336
        %v338 = vsel %vm318, %v337, %v333
        %vm339 = vcmask 1041409
        %v340 = vsel %vm339, %v338, %v319
        %v342 = vadd.f32 %v268, %v340
        %vm343 = vcmask 254976
        %344 = vst.msk [vmem:[#allocation2] sm:$0x3] %vm343, %v342
        %v345 = vld [vmem:[#allocation3] sm:$0x3]
        %346 = vmax.xlane.f32.xlu0 %v260
        %v347 = vpop.xlane.xlu0 %346
        %348 = vmax.xlane.f32.xlu0 %v261
        %v349 = vpop.xlane.xlu0 %348
        %350 = vmax.xlane.f32.xlu0 %v262
        %v351 = vpop.xlane.xlu0 %350
        %352 = vmax.xlane.f32.xlu0 %v263
        %v353 = vpop.xlane.xlu0 %352
        %354 = vmax.xlane.f32.xlu0 %v264
        %v355 = vpop.xlane.xlu0 %354
        %356 = vmax.xlane.f32.xlu0 %v265
        %v357 = vpop.xlane.xlu0 %356
        %358 = vmax.xlane.f32.xlu0 %v266
        %v359 = vpop.xlane.xlu0 %358
        %360 = vmax.xlane.f32.xlu0 %v267
        %v361 = vpop.xlane.xlu0 %360
        %v370 = vlaneseq
        %v371 = vshrl.u32 %v370, 7
        %v372 = vsub.s32 %v294, %v371
        %v373 = vrot.slane %v347, %v372
        %v374 = vlaneseq
        %v375 = vshrl.u32 %v374, 7
        %v376 = vsub.s32 %v299, %v375
        %v377 = vrot.slane %v349, %v376
        %v378 = vsel %vm304, %v377, %v373
        %v379 = vlaneseq
        %v380 = vshrl.u32 %v379, 7
        %v381 = vsub.s32 %v306, %v380
        %v382 = vrot.slane %v351, %v381
        %v383 = vsel %vm311, %v382, %v378
        %v384 = vlaneseq
        %v385 = vshrl.u32 %v384, 7
        %v386 = vsub.s32 %v313, %v385
        %v387 = vrot.slane %v353, %v386
        %v388 = vsel %vm318, %v387, %v383
        %v389 = vlaneseq
        %v390 = vshrl.u32 %v389, 7
        %v391 = vsub.s32 %v294, %v390
        %v392 = vrot.slane %v355, %v391
        %v393 = vlaneseq
        %v394 = vshrl.u32 %v393, 7
        %v395 = vsub.s32 %v299, %v394
        %v396 = vrot.slane %v357, %v395
        %v397 = vsel %vm304, %v396, %v392
        %v398 = vlaneseq
        %v399 = vshrl.u32 %v398, 7
        %v400 = vsub.s32 %v306, %v399
        %v401 = vrot.slane %v359, %v400
        %v402 = vsel %vm311, %v401, %v397
        %v403 = vlaneseq
        %v404 = vshrl.u32 %v403, 7
        %v405 = vsub.s32 %v313, %v404
        %v406 = vrot.slane %v361, %v405
        %v407 = vsel %vm318, %v406, %v402
        %v408 = vsel %vm339, %v407, %v388
        %v410 = vmax.f32 %v345, %v408
        %411 = vst.msk [vmem:[#allocation3] sm:$0x3] %vm343, %v410
        %p412 = scmp.eq.s32.totalorder %s25, 1
        // Predicated region
        $region49: #{tpu_custom_call.1} parent=39 // pred_check
          %p413 = pneg %p412
        $region50: #{tpu_custom_call.1} parent=39 // pred_check_branch
          %415 = sbr.rel (%p413) target = $region52
        $region51: #{tpu_custom_call.1} parent=39 // pred_region
          %v416 = vld [vmem:[#allocation2] sm:$0x3]
          %v417 = vmul.f32 %v416, 0.00390625
          %v418 = vld [vmem:[#allocation3] sm:$0x3]
          %v419 = vld [vmem:[%s1] sm:$0xff]
          %v420 = vld [vmem:[%s1 + $0x8] sm:$0xff]
          %v421 = vld [vmem:[%s1 + $0x10] sm:$0xff]
          %v422 = vld [vmem:[%s1 + $0x18] sm:$0xff]
          %vm423 = vcmask 261120
          %v425 = vsel %vm423, %v417, 0
          %427 = vmatprep.subr.mxu0 0.0
          %428 = vmatpush1.msra.mxu0 %v419
          %429 = vmatprep.subr.mxu0 0.0
          %430 = vmatpush1.msra.mxu0 %v420
          %431 = vmatprep.subr.mxu0 0.0
          %432 = vmatpush1.msra.mxu0 %v421
          %433 = vmatprep.subr.mxu0 0.0
          %434 = vmatpush1.msra.mxu0 %v422
          %435 = vmatprep.subr.mxu0 0.0
          %436 = vmatpush1.msra.mxu0 0.0
          %437 = vmatprep.subr.mxu0 0.0
          %438 = vmatpush1.msra.mxu0 0.0
          %439 = vmatprep.subr.mxu0 0.0
          %440 = vmatpush1.msra.mxu0 0.0
          %441 = vmatprep.subr.mxu0 0.0
          %442 = vmatpush1.msra.mxu0 0.0
          %443 = vmatprep.subr.mxu0 0.0
          %444 = vmatpush1.msra.mxu0 0.0
          %445 = vmatprep.subr.mxu0 0.0
          %446 = vmatpush1.msra.mxu0 0.0
          %447 = vmatprep.subr.mxu0 0.0
          %448 = vmatpush1.msra.mxu0 0.0
          %449 = vmatprep.subr.mxu0 0.0
          %450 = vmatpush1.msra.mxu0 0.0
          %451 = vmatprep.subr.mxu0 0.0
          %452 = vmatpush1.msra.mxu0 0.0
          %453 = vmatprep.subr.mxu0 0.0
          %454 = vmatpush1.msra.mxu0 0.0
          %455 = vmatprep.subr.mxu0 0.0
          %456 = vmatpush1.msra.mxu0 0.0
          %457 = vmatprep.subr.mxu0 0.0
          %458 = vmatpush1.msra.mxu0 0.0
          %459 = vmatprep.subr.mxu0 0.0
          %460 = vmatpush1.msra.mxu0 0.0
          %461 = vmatprep.subr.mxu0 0.0
          %462 = vmatpush1.msra.mxu0 0.0
          %463 = vmatprep.subr.mxu0 0.0
          %464 = vmatpush1.msra.mxu0 0.0
          %465 = vmatprep.subr.mxu0 0.0
          %466 = vmatpush1.msra.mxu0 0.0
          %467 = vmatprep.subr.mxu0 0.0
          %468 = vmatpush1.msra.mxu0 0.0
          %469 = vmatprep.subr.mxu0 0.0
          %470 = vmatpush1.msra.mxu0 0.0
          %471 = vmatprep.subr.mxu0 0.0
          %472 = vmatpush1.msra.mxu0 0.0
          %473 = vmatprep.subr.mxu0 0.0
          %474 = vmatpush1.msra.mxu0 0.0
          %475 = vmatprep.subr.mxu0 0.0
          %476 = vmatpush1.msra.mxu0 0.0
          %477 = vmatprep.subr.mxu0 0.0
          %478 = vmatpush1.msra.mxu0 0.0
          %479 = vmatprep.subr.mxu0 0.0
          %480 = vmatpush1.msra.mxu0 0.0
          %481 = vmatprep.subr.mxu0 0.0
          %482 = vmatpush1.msra.mxu0 0.0
          %483 = vmatprep.subr.mxu0 0.0
          %484 = vmatpush1.msra.mxu0 0.0
          %485 = vmatprep.subr.mxu0 0.0
          %486 = vmatpush1.msra.mxu0 0.0
          %487 = vmatprep.subr.mxu0 0.0
          %488 = vmatpush1.msra.mxu0 0.0
          %489 = vmatprep.subr.mxu0 0.0
          %490 = vmatpush1.msra.mxu0 0.0
          %491 = vmatprep.mubr.f32.mxu0 0.0
          %492 = vmatmul.mubr.f32.gmra.mrb[0].mxu0 %v425
          %v493 = vpop.f32.mrb[0].mxu0
          %v494 = vadd.f32 0.0, %v493
          %v495 = vpop.f32.mrb[0].mxu0
          %496 = vdwg.mxu0
          %v497 = vmax.f32 %v494, 0.0
          %v498 = vld [vmem:[%s2] sm:$0x3]
          %v499 = vld [vmem:[%s3] sm:$0xff]
          %v500 = vld [vmem:[%s3 + $0x8] sm:$0xff]
          %v501 = vld [vmem:[%s3 + $0x10] sm:$0xff]
          %v502 = vld [vmem:[%s3 + $0x18] sm:$0xff]
          %v504 = vsel %vm423, %v418, 0
          %506 = vmatprep.subr.mxu0 0.0
          %507 = vmatpush1.msra.mxu0 %v499
          %508 = vmatprep.subr.mxu0 0.0
          %509 = vmatpush1.msra.mxu0 %v500
          %510 = vmatprep.subr.mxu0 0.0
          %511 = vmatpush1.msra.mxu0 %v501
          %512 = vmatprep.subr.mxu0 0.0
          %513 = vmatpush1.msra.mxu0 %v502
          %514 = vmatprep.subr.mxu0 0.0
          %515 = vmatpush1.msra.mxu0 0.0
          %516 = vmatprep.subr.mxu0 0.0
          %517 = vmatpush1.msra.mxu0 0.0
          %518 = vmatprep.subr.mxu0 0.0
          %519 = vmatpush1.msra.mxu0 0.0
          %520 = vmatprep.subr.mxu0 0.0
          %521 = vmatpush1.msra.mxu0 0.0
          %522 = vmatprep.subr.mxu0 0.0
          %523 = vmatpush1.msra.mxu0 0.0
          %524 = vmatprep.subr.mxu0 0.0
          %525 = vmatpush1.msra.mxu0 0.0
          %526 = vmatprep.subr.mxu0 0.0
          %527 = vmatpush1.msra.mxu0 0.0
          %528 = vmatprep.subr.mxu0 0.0
          %529 = vmatpush1.msra.mxu0 0.0
          %530 = vmatprep.subr.mxu0 0.0
          %531 = vmatpush1.msra.mxu0 0.0
          %532 = vmatprep.subr.mxu0 0.0
          %533 = vmatpush1.msra.mxu0 0.0
          %534 = vmatprep.subr.mxu0 0.0
          %535 = vmatpush1.msra.mxu0 0.0
          %536 = vmatprep.subr.mxu0 0.0
          %537 = vmatpush1.msra.mxu0 0.0
          %538 = vmatprep.subr.mxu0 0.0
          %539 = vmatpush1.msra.mxu0 0.0
          %540 = vmatprep.subr.mxu0 0.0
          %541 = vmatpush1.msra.mxu0 0.0
          %542 = vmatprep.subr.mxu0 0.0
          %543 = vmatpush1.msra.mxu0 0.0
          %544 = vmatprep.subr.mxu0 0.0
          %545 = vmatpush1.msra.mxu0 0.0
          %546 = vmatprep.subr.mxu0 0.0
          %547 = vmatpush1.msra.mxu0 0.0
          %548 = vmatprep.subr.mxu0 0.0
          %549 = vmatpush1.msra.mxu0 0.0
          %550 = vmatprep.subr.mxu0 0.0
          %551 = vmatpush1.msra.mxu0 0.0
          %552 = vmatprep.subr.mxu0 0.0
          %553 = vmatpush1.msra.mxu0 0.0
          %554 = vmatprep.subr.mxu0 0.0
          %555 = vmatpush1.msra.mxu0 0.0
          %556 = vmatprep.subr.mxu0 0.0
          %557 = vmatpush1.msra.mxu0 0.0
          %558 = vmatprep.subr.mxu0 0.0
          %559 = vmatpush1.msra.mxu0 0.0
          %560 = vmatprep.subr.mxu0 0.0
          %561 = vmatpush1.msra.mxu0 0.0
          %562 = vmatprep.subr.mxu0 0.0
          %563 = vmatpush1.msra.mxu0 0.0
          %564 = vmatprep.subr.mxu0 0.0
          %565 = vmatpush1.msra.mxu0 0.0
          %566 = vmatprep.subr.mxu0 0.0
          %567 = vmatpush1.msra.mxu0 0.0
          %568 = vmatprep.subr.mxu0 0.0
          %569 = vmatpush1.msra.mxu0 0.0
          %570 = vmatprep.mubr.f32.mxu0 0.0
          %571 = vmatmul.mubr.f32.gmra.mrb[0].mxu0 %v504
          %v572 = vpop.f32.mrb[0].mxu0
          %v573 = vadd.f32 0.0, %v572
          %v574 = vpop.f32.mrb[0].mxu0
          %575 = vdwg.mxu0
          %v576 = vmax.f32 %v573, 0.0
          %v577 = vld [vmem:[%s4] sm:$0x3]
          %vm578 = vcmask 15360
          %v580 = vsel %vm578, %v576, 0
          %vm582 = vcmask 1041408
          %v584 = vsel %vm582, %v577, 0
          %586 = vmatprep.subr.mxu0 0.0
          %587 = vmatpush1.msra.mxu0 %v584
          %588 = vmatprep.subr.mxu0 0.0
          %589 = vmatpush1.msra.mxu0 0.0
          %590 = vmatprep.subr.mxu0 0.0
          %591 = vmatpush1.msra.mxu0 0.0
          %592 = vmatprep.subr.mxu0 0.0
          %593 = vmatpush1.msra.mxu0 0.0
          %594 = vmatprep.subr.mxu0 0.0
          %595 = vmatpush1.msra.mxu0 0.0
          %596 = vmatprep.subr.mxu0 0.0
          %597 = vmatpush1.msra.mxu0 0.0
          %598 = vmatprep.subr.mxu0 0.0
          %599 = vmatpush1.msra.mxu0 0.0
          %600 = vmatprep.subr.mxu0 0.0
          %601 = vmatpush1.msra.mxu0 0.0
          %602 = vmatprep.subr.mxu0 0.0
          %603 = vmatpush1.msra.mxu0 0.0
          %604 = vmatprep.subr.mxu0 0.0
          %605 = vmatpush1.msra.mxu0 0.0
          %606 = vmatprep.subr.mxu0 0.0
          %607 = vmatpush1.msra.mxu0 0.0
          %608 = vmatprep.subr.mxu0 0.0
          %609 = vmatpush1.msra.mxu0 0.0
          %610 = vmatprep.subr.mxu0 0.0
          %611 = vmatpush1.msra.mxu0 0.0
          %612 = vmatprep.subr.mxu0 0.0
          %613 = vmatpush1.msra.mxu0 0.0
          %614 = vmatprep.subr.mxu0 0.0
          %615 = vmatpush1.msra.mxu0 0.0
          %616 = vmatprep.subr.mxu0 0.0
          %617 = vmatpush1.msra.mxu0 0.0
          %618 = vmatprep.subr.mxu0 0.0
          %619 = vmatpush1.msra.mxu0 0.0
          %620 = vmatprep.subr.mxu0 0.0
          %621 = vmatpush1.msra.mxu0 0.0
          %622 = vmatprep.subr.mxu0 0.0
          %623 = vmatpush1.msra.mxu0 0.0
          %624 = vmatprep.subr.mxu0 0.0
          %625 = vmatpush1.msra.mxu0 0.0
          %626 = vmatprep.subr.mxu0 0.0
          %627 = vmatpush1.msra.mxu0 0.0
          %628 = vmatprep.subr.mxu0 0.0
          %629 = vmatpush1.msra.mxu0 0.0
          %630 = vmatprep.subr.mxu0 0.0
          %631 = vmatpush1.msra.mxu0 0.0
          %632 = vmatprep.subr.mxu0 0.0
          %633 = vmatpush1.msra.mxu0 0.0
          %634 = vmatprep.subr.mxu0 0.0
          %635 = vmatpush1.msra.mxu0 0.0
          %636 = vmatprep.subr.mxu0 0.0
          %637 = vmatpush1.msra.mxu0 0.0
          %638 = vmatprep.subr.mxu0 0.0
          %639 = vmatpush1.msra.mxu0 0.0
          %640 = vmatprep.subr.mxu0 0.0
          %641 = vmatpush1.msra.mxu0 0.0
          %642 = vmatprep.subr.mxu0 0.0
          %643 = vmatpush1.msra.mxu0 0.0
          %644 = vmatprep.subr.mxu0 0.0
          %645 = vmatpush1.msra.mxu0 0.0
          %646 = vmatprep.subr.mxu0 0.0
          %647 = vmatpush1.msra.mxu0 0.0
          %648 = vmatprep.subr.mxu0 0.0
          %649 = vmatpush1.msra.mxu0 0.0
          %650 = vmatprep.mubr.f32.mxu0 0.0
          %651 = vmatmul.mubr.f32.gmra.mrb[0].mxu0 %v580
          %v652 = vpop.f32.mrb[0].mxu0
          %v653 = vadd.f32 0.0, %v652
          %v654 = vpop.f32.mrb[0].mxu0
          %655 = vdwg.mxu0
          %v657 = vsel %vm578, %v497, 0
          %v660 = vsel %vm582, %v498, 0
          %662 = vmatprep.subr.mxu0 0.0
          %663 = vmatpush1.msra.mxu0 %v660
          %664 = vmatprep.subr.mxu0 0.0
          %665 = vmatpush1.msra.mxu0 0.0
          %666 = vmatprep.subr.mxu0 0.0
          %667 = vmatpush1.msra.mxu0 0.0
          %668 = vmatprep.subr.mxu0 0.0
          %669 = vmatpush1.msra.mxu0 0.0
          %670 = vmatprep.subr.mxu0 0.0
          %671 = vmatpush1.msra.mxu0 0.0
          %672 = vmatprep.subr.mxu0 0.0
          %673 = vmatpush1.msra.mxu0 0.0
          %674 = vmatprep.subr.mxu0 0.0
          %675 = vmatpush1.msra.mxu0 0.0
          %676 = vmatprep.subr.mxu0 0.0
          %677 = vmatpush1.msra.mxu0 0.0
          %678 = vmatprep.subr.mxu0 0.0
          %679 = vmatpush1.msra.mxu0 0.0
          %680 = vmatprep.subr.mxu0 0.0
          %681 = vmatpush1.msra.mxu0 0.0
          %682 = vmatprep.subr.mxu0 0.0
          %683 = vmatpush1.msra.mxu0 0.0
          %684 = vmatprep.subr.mxu0 0.0
          %685 = vmatpush1.msra.mxu0 0.0
          %686 = vmatprep.subr.mxu0 0.0
          %687 = vmatpush1.msra.mxu0 0.0
          %688 = vmatprep.subr.mxu0 0.0
          %689 = vmatpush1.msra.mxu0 0.0
          %690 = vmatprep.subr.mxu0 0.0
          %691 = vmatpush1.msra.mxu0 0.0
          %692 = vmatprep.subr.mxu0 0.0
          %693 = vmatpush1.msra.mxu0 0.0
          %694 = vmatprep.subr.mxu0 0.0
          %695 = vmatpush1.msra.mxu0 0.0
          %696 = vmatprep.subr.mxu0 0.0
          %697 = vmatpush1.msra.mxu0 0.0
          %698 = vmatprep.subr.mxu0 0.0
          %699 = vmatpush1.msra.mxu0 0.0
          %700 = vmatprep.subr.mxu0 0.0
          %701 = vmatpush1.msra.mxu0 0.0
          %702 = vmatprep.subr.mxu0 0.0
          %703 = vmatpush1.msra.mxu0 0.0
          %704 = vmatprep.subr.mxu0 0.0
          %705 = vmatpush1.msra.mxu0 0.0
          %706 = vmatprep.subr.mxu0 0.0
          %707 = vmatpush1.msra.mxu0 0.0
          %708 = vmatprep.subr.mxu0 0.0
          %709 = vmatpush1.msra.mxu0 0.0
          %710 = vmatprep.subr.mxu0 0.0
          %711 = vmatpush1.msra.mxu0 0.0
          %712 = vmatprep.subr.mxu0 0.0
          %713 = vmatpush1.msra.mxu0 0.0
          %714 = vmatprep.subr.mxu0 0.0
          %715 = vmatpush1.msra.mxu0 0.0
          %716 = vmatprep.subr.mxu0 0.0
          %717 = vmatpush1.msra.mxu0 0.0
          %718 = vmatprep.subr.mxu0 0.0
          %719 = vmatpush1.msra.mxu0 0.0
          %720 = vmatprep.subr.mxu0 0.0
          %721 = vmatpush1.msra.mxu0 0.0
          %722 = vmatprep.subr.mxu0 0.0
          %723 = vmatpush1.msra.mxu0 0.0
          %724 = vmatprep.subr.mxu0 0.0
          %725 = vmatpush1.msra.mxu0 0.0
          %726 = vmatprep.mubr.f32.mxu0 0.0
          %727 = vmatmul.mubr.f32.gmra.mrb[0].mxu0 %v657
          %v728 = vpop.f32.mrb[0].mxu0
          %v729 = vadd.f32 %v653, %v728
          %v730 = vpop.f32.mrb[0].mxu0
          %731 = vdwg.mxu0
          %v732 = vxor.u32 %v729, 2147483648
          %v733 = vmul.f32 %v732, 1.442695
          %v734 = vpow.pop %v733
          %v735 = vadd.f32 %v734, 1.0
          %v736 = vrcp.pop %v735
          %v737 = vmul.f32 1.0, %v736
          %738 = vst.msk [vmem:[#allocation7] sm:$0x3] %vm343, %v737
        $region52: #{tpu_custom_call.1} parent=39 // pred_fallthru
          _
        // Predicated region
        $region53: #{tpu_custom_call.1} parent=39 // pred_check
          %p739 = pneg %p162
        $region54: #{tpu_custom_call.1} parent=39 // pred_check_branch
          %741 = sbr.rel (%p739) target = $region56
        $region55: #{tpu_custom_call.1} parent=39 // pred_region
          %s743 = ssub.s32 32, 32
          %744 = vsyncadd [#allocation6], %s743
          %s745 = smul.addr %s24, 32
          %s746 = scalar_lea.hbm %s5, %s745
          %s748 = sshll.u32 [#allocation7], 4
          %s749 = int_to_ptr.vmem [resolvable:$true] %s748
          %751 = dma.vmem_to_hbm [thread:$0]  %s749, 32, %s746, [#allocation6]
        $region56: #{tpu_custom_call.1} parent=39 // pred_fallthru
          _
        // Predicated region
        $region57: #{tpu_custom_call.1} parent=39 // pred_check
          %p752 = pneg %p162
        $region58: #{tpu_custom_call.1} parent=39 // pred_check_branch
          %754 = sbr.rel (%p752) target = $region60
        $region59: #{tpu_custom_call.1} parent=39 // pred_region
          %755 = dma.done [#allocation6], 32
        $region60: #{tpu_custom_call.1} parent=39 // pred_fallthru
          _
      $region40: #{tpu_custom_call.1} parent=5 // pred_fallthru
        _
      %p756 = scmp.le.s32.totalorder 2, %s15
      // Predicated region
      $region61: #{tpu_custom_call.1} parent=5 // pred_check
        %p757 = pneg %p756
      $region62: #{tpu_custom_call.1} parent=5 // pred_check_branch
        %759 = sbr.rel (%p757) target = $region64
      $region63: #{tpu_custom_call.1} parent=5 // pred_region
        %s760 = ssub.s32 %s15, 2
      $region64: #{tpu_custom_call.1} parent=5 // pred_fallthru
        _
    $region6: #{tpu_custom_call.1} parent=1 // loop_footer
      %s19 = sadd.s32 1, %s15
    $region7: #{tpu_custom_call.1} parent=1 // loop_footer_branch
      %14 = sbr.rel target = $region3
    $region8: #{tpu_custom_call.1} parent=1 // loop_exit
      _
    %761 = vsyncpa [#allocation5], 1
    %s762 = scalar_lea.sflag [#allocation5], 1
    %763 = vsyncpa %s762, 1
    %764 = vsyncpa [#allocation6], 1
    %s765 = scalar_lea.sflag [#allocation6], 1
    %766 = vsyncpa %s765, 1

</llo_original>
